<compile_context>
chip_gen: v6e
topology: v6e:2x2x1
jax: 0.10.0
libtpu: 0.0.40
codegen_flags: <defaults>
</compile_context>

<pallas_src>
import math

import jax
import jax.numpy as jnp
from jax import lax
from jax.experimental import pallas as pl
from jax.experimental.pallas import tpu as pltpu

_LANE = 128


def _sublanes(itemsize):
    # native sublane packing: f32 -> 8, bf16 -> 16, int8/fp8 -> 32
    return 32 // int(itemsize)


def _lcm(*vals):
    out = 1
    for v in vals:
        out = out * v // math.gcd(out, v)
    return out


def _round_up(x, m):
    return -(-x // m) * m


def _vmem_capacity_bytes():
    try:
        info = pltpu.get_tpu_info()
        cap = getattr(info, "vmem_capacity_bytes", None)
        if cap:
            return int(cap)
    except Exception:
        pass
    return 64 * 1024 * 1024   # conservative default: v7x per-TensorCore VMEM


def _pick_block_n(n, n_classes, latent_dim, x_itemsize, lat_itemsize, packed,
                  budget_bytes, round_to):
    # VMEM footprint of one pipelined buffer set per batch row, *including*
    # lane padding to 128 (that is what limits block_n, not HBM payload).
    per_row = _round_up(n_classes, _LANE) * x_itemsize        # recon_x tile
    per_row += _LANE * 4                                      # (bn,1) i32 targets, lane-padded
    if packed:
        per_row += 2 * latent_dim * lat_itemsize              # lane-dense mean/logstd
    else:
        per_row += 2 * _round_up(latent_dim, _LANE) * lat_itemsize
    block_n = int(budget_bytes) // max(int(per_row), 1)
    block_n = min(block_n, 1 << 17)
    if block_n >= n:
        return n
    block_n = (block_n // round_to) * round_to
    return max(block_n, round_to)


def _make_kernel(block_n, blocks_per_core, n_rows, n_classes, latent_dim,
                 packed, need_mask):
    def kernel(x_ref, tgt_ref, mu_ref, lv_ref, nll_ref, kld_ref):
        c = pl.program_id(0)               # core split (parallel)
        i = pl.program_id(1)               # streaming reduction (arbitrary)
        g = c * blocks_per_core + i        # unclamped global block id

        @pl.when(i == 0)
        def _init():
            nll_ref[...] = jnp.zeros_like(nll_ref)
            kld_ref[...] = jnp.zeros_like(kld_ref)

        if need_mask:
            rows = g * block_n + lax.broadcasted_iota(jnp.int32, (block_n, 1), 0)
            row_valid = rows < n_rows                          # (bn, 1)

        # ---- NLL partial: sum_r x[r, tgt[r]] (mask-compare-select gather) --
        x = x_ref[...].astype(jnp.float32)                     # (bn, C)
        tgt = tgt_ref[...]                                     # (bn, 1) int32
        col_ids = lax.broadcasted_iota(jnp.int32, (block_n, n_classes), 1)
        pick = col_ids == tgt
        if need_mask:
            pick = pick & row_valid
        nll_ref[...] += jnp.sum(jnp.where(pick, x, 0.0), keepdims=True)

        # ---- KLD partial: sum(logvar - mu^2 - exp(logvar)) ------------------
        mu = mu_ref[...].astype(jnp.float32)
        lv = lv_ref[...].astype(jnp.float32)
        if need_mask:
            if packed:
                shp = mu.shape                                 # (bn*D/128, 128)
                flat = (g * (block_n * latent_dim)
                        + lax.broadcasted_iota(jnp.int32, shp, 0) * _LANE
                        + lax.broadcasted_iota(jnp.int32, shp, 1))
                lat_valid = flat < n_rows * latent_dim
            else:
                lat_valid = row_valid                          # bcast over D
            # defensive: keep exp() off OOB garbage, then zero the term
            mu = jnp.where(lat_valid, mu, 0.0)
            lv = jnp.where(lat_valid, lv, 0.0)
        term = lv - mu * mu - jnp.exp(lv)
        if need_mask:
            term = jnp.where(lat_valid, term, 0.0)
        kld_ref[...] += jnp.sum(term, keepdims=True)

    return kernel


def nll_loss_criterion(recon_x, true_indexes, mean, logstd, kld_weight, *,
                       block_n=None):
    """Equivalent of NLLLoss_criterion()(dict_, true_indexes) with defaults."""
    n, n_classes = recon_x.shape
    latent_dim = mean.shape[-1]
    x_item = jnp.dtype(recon_x.dtype).itemsize
    lat_item = jnp.dtype(mean.dtype).itemsize

    # ---- sublane / lane granularities -------------------------------------
    sub_x = _sublanes(x_item)
    sub_lat = _sublanes(lat_item)
    round_base = _lcm(8, sub_x, sub_lat)

    # lane-dense packing of mean/logstd: (n, D) -> (n*D/128, 128) when D | 128
    pack_ok = (0 < latent_dim <= _LANE and _LANE % latent_dim == 0
               and n % (_LANE // latent_dim) == 0)
    pack_round = (_lcm(round_base, sub_lat * _LANE // latent_dim)
                  if pack_ok else round_base)

    # ---- VMEM budget -------------------------------------------------------
    vmem_cap = _vmem_capacity_bytes()
    vmem_limit = max(32 * 1024 * 1024,
                     min(vmem_cap * 3 // 4, 100 * 1024 * 1024))
    buf_set_budget = min((vmem_limit - 8 * 1024 * 1024) // 2, 32 * 1024 * 1024)

    if block_n is None:
        block_n = _pick_block_n(n, n_classes, latent_dim, x_item, lat_item,
                                pack_ok, buf_set_budget,
                                pack_round if pack_ok else round_base)
    block_n = min(int(block_n), n)
    if block_n != n:
        assert block_n % round_base == 0, (
            f"block_n must be a multiple of {round_base} (sublane packing)")
    packed = pack_ok and (block_n == n or block_n % pack_round == 0)

    num_blocks = -(-n // block_n)
    n_cores = 2 if num_blocks >= 2 else 1     # use both TCs on v7x; ~free elsewhere
    blocks_per_core = -(-num_blocks // n_cores)
    need_mask = n_cores * blocks_per_core * block_n > n
    clamp = n_cores * blocks_per_core > num_blocks

    def gblk(c, i):
        g = c * blocks_per_core + i
        if clamp:
            g = jnp.minimum(g, num_blocks - 1)   # duplicate tail block; fully masked
        return g

    tgt2d = true_indexes.astype(jnp.int32).reshape(n, 1)
    if packed:
        lat_rows = n * latent_dim // _LANE
        mean_in = mean.reshape(lat_rows, _LANE)
        logstd_in = logstd.reshape(lat_rows, _LANE)
        lat_block = (block_n * latent_dim // _LANE, _LANE)
    else:
        mean_in, logstd_in = mean, logstd
        lat_block = (block_n, latent_dim)

    kernel = _make_kernel(block_n, blocks_per_core, n, n_classes, latent_dim,
                          packed, need_mask)

    cost = pl.CostEstimate(
        flops=3 * n * n_classes + 5 * n * latent_dim,
        transcendentals=n * latent_dim,
        bytes_accessed=(n * n_classes * x_item + 2 * n * latent_dim * lat_item
                        + n * 4 + 8 * n_cores),
    )

    nll_part, kld_part = pl.pallas_call(
        kernel,
        out_shape=(jax.ShapeDtypeStruct((n_cores, 1), jnp.float32),
                   jax.ShapeDtypeStruct((n_cores, 1), jnp.float32)),
        grid_spec=pltpu.PrefetchScalarGridSpec(
            num_scalar_prefetch=0,
            grid=(n_cores, blocks_per_core),
            in_specs=[
                pl.BlockSpec((block_n, n_classes), lambda c, i: (gblk(c, i), 0)),
                pl.BlockSpec((block_n, 1), lambda c, i: (gblk(c, i), 0)),
                pl.BlockSpec(lat_block, lambda c, i: (gblk(c, i), 0)),
                pl.BlockSpec(lat_block, lambda c, i: (gblk(c, i), 0)),
            ],
            out_specs=[
                pl.BlockSpec((1, 1), lambda c, i: (c, 0)),
                pl.BlockSpec((1, 1), lambda c, i: (c, 0)),
            ],
        ),
        compiler_params=pltpu.CompilerParams(
            dimension_semantics=("parallel", "arbitrary"),
            vmem_limit_bytes=int(vmem_limit),
        ),
        cost_estimate=cost,
    )(recon_x, tgt2d, mean_in, logstd_in)

    # Final affine combination (mean, the "+1" KLD constant, kld_weight) done
    # once here -> kernel carries no scalar operands.
    loss = -jnp.sum(nll_part) / float(n)
    kld = 0.5 * (float(n * latent_dim) + jnp.sum(kld_part))
    kw = jnp.asarray(kld_weight, dtype=jnp.float32).reshape(())
    return loss - kw * kld


def _reference(recon_x, true_indexes, mean, logstd, kld_weight):
    n = recon_x.shape[0]
    x32 = recon_x.astype(jnp.float32)
    loss = -jnp.mean(x32[jnp.arange(n), true_indexes])
    mu = mean.astype(jnp.float32)
    lv = logstd.astype(jnp.float32)
    kld = 0.5 * jnp.sum(1.0 + lv - mu ** 2 - jnp.exp(lv))
    return loss - kld_weight * kld


if __name__ == "__main__":
    key = jax.random.PRNGKey(0)
    keys = jax.random.split(key, 12)

    # ---- Case 1: small shapes, single block, packed latents ----------------
    N, C, D = 8, 32, 16
    logits = jax.random.normal(keys[0], (N, C), dtype=jnp.float32)
    recon_x = jax.nn.log_softmax(logits, axis=-1)      # NLLLoss expects log-probs
    true_indexes = jax.random.randint(keys[1], (N,), 0, C, dtype=jnp.int32)
    mean = 0.5 * jax.random.normal(keys[2], (N, D), dtype=jnp.float32)
    logstd = 0.1 * jax.random.normal(keys[3], (N, D), dtype=jnp.float32)
    kld_weight = 0.1                                    # static python float

    total = nll_loss_criterion(recon_x, true_indexes, mean, logstd, kld_weight)
    total = jax.block_until_ready(total)
    ref = _reference(recon_x, true_indexes, mean, logstd, kld_weight)
    assert jnp.allclose(total, ref, rtol=1e-5, atol=1e-5), (total, ref)

    # ---- Case 2: tiled batch, ragged tail, unpacked latents, traced kw -----
    N2, C2, D2 = 50, 24, 12
    logits2 = jax.random.normal(keys[4], (N2, C2), dtype=jnp.float32)
    recon_x2 = jax.nn.log_softmax(logits2, axis=-1)
    true_indexes2 = jax.random.randint(keys[5], (N2,), 0, C2, dtype=jnp.int32)
    mean2 = 0.5 * jax.random.normal(keys[6], (N2, D2), dtype=jnp.float32)
    logstd2 = 0.1 * jax.random.normal(keys[7], (N2, D2), dtype=jnp.float32)
    kld_weight2 = jnp.float32(0.25)                     # traced scalar

    total2 = nll_loss_criterion(recon_x2, true_indexes2, mean2, logstd2,
                                kld_weight2, block_n=16)   # grid=(2,2), ragged
    total2 = jax.block_until_ready(total2)
    ref2 = _reference(recon_x2, true_indexes2, mean2, logstd2, kld_weight2)
    assert jnp.allclose(total2, ref2, rtol=1e-5, atol=1e-5), (total2, ref2)

    # ---- Case 3: packed latents, odd block count -> clamped duplicate block
    N3, C3, D3 = 80, 48, 32
    logits3 = jax.random.normal(keys[8], (N3, C3), dtype=jnp.float32)
    recon_x3 = jax.nn.log_softmax(logits3, axis=-1)
    true_indexes3 = jax.random.randint(keys[9], (N3,), 0, C3, dtype=jnp.int32)
    mean3 = 0.3 * jax.random.normal(keys[10], (N3, D3), dtype=jnp.float32)
    logstd3 = 0.1 * jax.random.normal(keys[11], (N3, D3), dtype=jnp.float32)
    kld_weight3 = 0.3

    total3 = nll_loss_criterion(recon_x3, true_indexes3, mean3, logstd3,
                                kld_weight3, block_n=32)   # 3 blocks on 2 cores
    total3 = jax.block_until_ready(total3)
    ref3 = _reference(recon_x3, true_indexes3, mean3, logstd3, kld_weight3)
    assert jnp.allclose(total3, ref3, rtol=1e-4, atol=1e-4), (total3, ref3)

    print("KERNEL_OK")
</pallas_src>

<mosaic_0001>
module attributes {stable_mosaic.version = 11 : i64} {
  func.func @kernel(%arg0: i32, %arg1: i32, %arg2: memref<8x32xf32, #tpu.memory_space<vmem>>, %arg3: memref<8x1xi32, #tpu.memory_space<vmem>>, %arg4: memref<1x128xf32, #tpu.memory_space<vmem>>, %arg5: memref<1x128xf32, #tpu.memory_space<vmem>>, %arg6: memref<1x1xf32, #tpu.memory_space<vmem>>, %arg7: memref<1x1xf32, #tpu.memory_space<vmem>>) attributes {dimension_semantics = [#tpu.dimension_semantics<parallel>, #tpu.dimension_semantics<arbitrary>], iteration_bounds = array<i64: 1, 1>, scalar_prefetch = 0 : i64, scratch_operands = 0 : i64, tpu.core_type = #tpu.core_type<tc>, window_params = [{transform_indices = @transform_0, window_bounds = array<i64: 8, 32>}, {transform_indices = @transform_1, window_bounds = array<i64: 8, 1>}, {transform_indices = @transform_2, window_bounds = array<i64: 1, 128>}, {transform_indices = @transform_3, window_bounds = array<i64: 1, 128>}, {transform_indices = @transform_4, window_bounds = array<i64: 1, 1>}, {transform_indices = @transform_5, window_bounds = array<i64: 1, 1>}]} {
    %c0_i32 = arith.constant 0 : i32
    %0 = arith.cmpi eq, %arg1, %c0_i32 : i32
    %1 = arith.extui %0 : i1 to i32
    %c0_i32_0 = arith.constant 0 : i32
    %2 = arith.cmpi ne, %1, %c0_i32_0 : i32
    scf.if %2 {
      %cst_18 = arith.constant 0.000000e+00 : f32
      %32 = vector.broadcast %cst_18 : f32 to vector<1x1xf32>
      %c0_19 = arith.constant 0 : index
      %c0_20 = arith.constant 0 : index
      %33 = vector.load %arg6[%c0_19, %c0_20] : memref<1x1xf32, #tpu.memory_space<vmem>>, vector<1x1xf32>
      tpu.vector_store %arg6[%c0_19, %c0_20], %32 {strides = array<i32>} : memref<1x1xf32, #tpu.memory_space<vmem>>, vector<1x1xf32>,
      %cst_21 = arith.constant 0.000000e+00 : f32
      %34 = vector.broadcast %cst_21 : f32 to vector<1x1xf32>
      %c0_22 = arith.constant 0 : index
      %c0_23 = arith.constant 0 : index
      %35 = vector.load %arg7[%c0_22, %c0_23] : memref<1x1xf32, #tpu.memory_space<vmem>>, vector<1x1xf32>
      tpu.vector_store %arg7[%c0_22, %c0_23], %34 {strides = array<i32>} : memref<1x1xf32, #tpu.memory_space<vmem>>, vector<1x1xf32>,
    } else {
    }
    %c0 = arith.constant 0 : index
    %c0_1 = arith.constant 0 : index
    %3 = vector.load %arg2[%c0, %c0_1] : memref<8x32xf32, #tpu.memory_space<vmem>>, vector<8x32xf32>
    %c0_2 = arith.constant 0 : index
    %c0_3 = arith.constant 0 : index
    %4 = vector.load %arg3[%c0_2, %c0_3] : memref<8x1xi32, #tpu.memory_space<vmem>>, vector<8x1xi32>
    %5 = tpu.iota {dimensions = array<i32: 1>} : vector<8x32xi32>
    %6 = vector.broadcast %4 : vector<8x1xi32> to vector<8x32xi32>
    %7 = arith.cmpi eq, %5, %6 : vector<8x32xi32>
    %c0_4 = arith.constant 0 : index
    %c0_5 = arith.constant 0 : index
    %8 = vector.load %arg6[%c0_4, %c0_5] : memref<1x1xf32, #tpu.memory_space<vmem>>, vector<1x1xf32>
    %cst = arith.constant 0.000000e+00 : f32
    %9 = vector.broadcast %cst : f32 to vector<8x32xf32>
    %10 = arith.select %7, %3, %9 : vector<8x32xi1>, vector<8x32xf32>
    %11 = vector.shape_cast %10 : vector<8x32xf32> to vector<1x8x32xf32>
    %cst_6 = arith.constant dense<0.000000e+00> : vector<1xf32>
    %12 = vector.multi_reduction <add>, %11, %cst_6 [1, 2] : vector<1x8x32xf32> to vector<1xf32>
    %13 = vector.shape_cast %12 : vector<1xf32> to vector<1x1x1xf32>
    %14 = vector.extract %13[0, 0, 0] : f32 from vector<1x1x1xf32>
    %15 = vector.broadcast %14 : f32 to vector<1x1xf32>
    %16 = arith.addf %8, %15 : vector<1x1xf32>
    %c0_7 = arith.constant 0 : index
    %c0_8 = arith.constant 0 : index
    %17 = vector.load %arg6[%c0_7, %c0_8] : memref<1x1xf32, #tpu.memory_space<vmem>>, vector<1x1xf32>
    tpu.vector_store %arg6[%c0_7, %c0_8], %16 {strides = array<i32>} : memref<1x1xf32, #tpu.memory_space<vmem>>, vector<1x1xf32>,
    %c0_9 = arith.constant 0 : index
    %c0_10 = arith.constant 0 : index
    %18 = vector.load %arg4[%c0_9, %c0_10] : memref<1x128xf32, #tpu.memory_space<vmem>>, vector<1x128xf32>
    %c0_11 = arith.constant 0 : index
    %c0_12 = arith.constant 0 : index
    %19 = vector.load %arg5[%c0_11, %c0_12] : memref<1x128xf32, #tpu.memory_space<vmem>>, vector<1x128xf32>
    %20 = arith.mulf %18, %18 : vector<1x128xf32>
    %21 = arith.subf %19, %20 : vector<1x128xf32>
    %22 = math.exp %19 : vector<1x128xf32>
    %23 = arith.subf %21, %22 : vector<1x128xf32>
    %c0_13 = arith.constant 0 : index
    %c0_14 = arith.constant 0 : index
    %24 = vector.load %arg7[%c0_13, %c0_14] : memref<1x1xf32, #tpu.memory_space<vmem>>, vector<1x1xf32>
    %25 = vector.shape_cast %23 : vector<1x128xf32> to vector<1x1x128xf32>
    %cst_15 = arith.constant dense<0.000000e+00> : vector<1xf32>
    %26 = vector.multi_reduction <add>, %25, %cst_15 [1, 2] : vector<1x1x128xf32> to vector<1xf32>
    %27 = vector.shape_cast %26 : vector<1xf32> to vector<1x1x1xf32>
    %28 = vector.extract %27[0, 0, 0] : f32 from vector<1x1x1xf32>
    %29 = vector.broadcast %28 : f32 to vector<1x1xf32>
    %30 = arith.addf %24, %29 : vector<1x1xf32>
    %c0_16 = arith.constant 0 : index
    %c0_17 = arith.constant 0 : index
    %31 = vector.load %arg7[%c0_16, %c0_17] : memref<1x1xf32, #tpu.memory_space<vmem>>, vector<1x1xf32>
    tpu.vector_store %arg7[%c0_16, %c0_17], %30 {strides = array<i32>} : memref<1x1xf32, #tpu.memory_space<vmem>>, vector<1x1xf32>,
    return
  }
  func.func @transform_0(%arg0: i32, %arg1: i32) -> (i32, i32) {
    %c1_i32 = arith.constant 1 : i32
    %0 = arith.muli %arg0, %c1_i32 : i32
    %1 = arith.addi %0, %arg1 : i32
    %c0_i32 = arith.constant 0 : i32
    %c0_i32_0 = arith.constant 0 : i32
    return %1, %c0_i32 : i32, i32
  }
  func.func @transform_1(%arg0: i32, %arg1: i32) -> (i32, i32) {
    %c1_i32 = arith.constant 1 : i32
    %0 = arith.muli %arg0, %c1_i32 : i32
    %1 = arith.addi %0, %arg1 : i32
    %c0_i32 = arith.constant 0 : i32
    %c0_i32_0 = arith.constant 0 : i32
    return %1, %c0_i32 : i32, i32
  }
  func.func @transform_2(%arg0: i32, %arg1: i32) -> (i32, i32) {
    %c1_i32 = arith.constant 1 : i32
    %0 = arith.muli %arg0, %c1_i32 : i32
    %1 = arith.addi %0, %arg1 : i32
    %c0_i32 = arith.constant 0 : i32
    %c0_i32_0 = arith.constant 0 : i32
    return %1, %c0_i32 : i32, i32
  }
  func.func @transform_3(%arg0: i32, %arg1: i32) -> (i32, i32) {
    %c1_i32 = arith.constant 1 : i32
    %0 = arith.muli %arg0, %c1_i32 : i32
    %1 = arith.addi %0, %arg1 : i32
    %c0_i32 = arith.constant 0 : i32
    %c0_i32_0 = arith.constant 0 : i32
    return %1, %c0_i32 : i32, i32
  }
  func.func @transform_4(%arg0: i32, %arg1: i32) -> (i32, i32) {
    %c0_i32 = arith.constant 0 : i32
    %c0_i32_0 = arith.constant 0 : i32
    return %arg0, %c0_i32 : i32, i32
  }
  func.func @transform_5(%arg0: i32, %arg1: i32) -> (i32, i32) {
    %c0_i32 = arith.constant 0 : i32
    %c0_i32_0 = arith.constant 0 : i32
    return %arg0, %c0_i32 : i32, i32
  }
}

</mosaic_0001>

<llo_original>
// kernel: tpu_custom_call.1
$region0: #{tpu_custom_call.1}
  #allocation0 [shape = 'u32[]', space=smem, size = 0x4, offset = 0x4, fixed_abs, tag = 'smem constant byte address 0x4 - core index']
  #allocation1 [shape = 'u32[144,128]{1,0:T(1,128)}', space=vmem, size = 0x12000, scoped, tag = 'internal scratch']
  %s0 = inlined_call_operand.vmem [shape: f32[8,32], index: 0, kind: input, shape index: {}]
  %s1 = inlined_call_operand.vmem [shape: s32[8,1], index: 1, kind: input, shape index: {}]
  %s2 = inlined_call_operand.vmem [shape: f32[1,128], index: 2, kind: input, shape index: {}]
  %s3 = inlined_call_operand.vmem [shape: f32[1,128], index: 3, kind: input, shape index: {}]
  %s4 = inlined_call_operand.hbm [shape: f32[1,1], index: 4, kind: output, shape index: {0}]
  %s5 = inlined_call_operand.hbm [shape: f32[1,1], index: 5, kind: output, shape index: {1}]
  %6 = xla_tuple %s4, %s5
  %s7 = sld [smem:[#allocation0]]
  $region38: #{tpu_custom_call.1} parent=0
    _
  %s9 = ssub.s32 1, %s7
  %s10 = scalar_select 0, %s9, %s7
  $region1: #{tpu_custom_call.1} parent=0
    #allocation2 [shape = 'u8[512]{0}', space=vmem, size = 0x400, scoped, tag = 'output window, operand 0, single buffered']
    #allocation3 [shape = 's32[1]{0}', space=sflag, size = 0x4, scoped, tag = 'scoped memory for tpu_custom_call.1']
    #allocation4 [shape = 'u8[512]{0}', space=vmem, size = 0x400, scoped, tag = 'output window, operand 1, single buffered']
    #allocation5 [shape = 's32[1]{0}', space=sflag, size = 0x4, scoped, tag = 'scoped memory for tpu_custom_call.1']
    %11 = vsyncpa [#allocation3], 0
    %12 = vsyncpa [#allocation5], 0
    // Predicated region
    $region2: #{tpu_custom_call.1} parent=1 // pred_check
      _
    $region3: #{tpu_custom_call.1} parent=1 // pred_check_branch
      %14 = sbr.rel (0) target = $region5
    $region4: #{tpu_custom_call.1} parent=1 // pred_region
      %s15 = sadd.s32 0, 0
      %p16 = scmp.lt.s32.totalorder %s15, 0
      %s17 = scalar_select %p16, %s15, 0
      %s18 = smul.addr %s17, 8
      %s19 = scalar_lea.vmem %s0, %s18
      %s20 = sadd.s32 0, 0
    $region5: #{tpu_custom_call.1} parent=1 // pred_fallthru
      _
    // Predicated region
    $region6: #{tpu_custom_call.1} parent=1 // pred_check
      _
    $region7: #{tpu_custom_call.1} parent=1 // pred_check_branch
      %22 = sbr.rel (0) target = $region9
    $region8: #{tpu_custom_call.1} parent=1 // pred_region
      %s23 = sadd.s32 0, 0
      %p24 = scmp.lt.s32.totalorder %s23, 0
      %s25 = scalar_select %p24, %s23, 0
      %s26 = smul.addr %s25, 8
      %s27 = scalar_lea.vmem %s1, %s26
      %s28 = sadd.s32 0, 0
    $region9: #{tpu_custom_call.1} parent=1 // pred_fallthru
      _
    // Predicated region
    $region10: #{tpu_custom_call.1} parent=1 // pred_check
      _
    $region11: #{tpu_custom_call.1} parent=1 // pred_check_branch
      %30 = sbr.rel (0) target = $region13
    $region12: #{tpu_custom_call.1} parent=1 // pred_region
      %s31 = sadd.s32 0, 0
      %p32 = scmp.lt.s32.totalorder %s31, 0
      %s33 = scalar_select %p32, %s31, 0
      %s34 = scalar_lea.vmem %s2, %s33
      %s35 = sadd.s32 0, 0
    $region13: #{tpu_custom_call.1} parent=1 // pred_fallthru
      _
    // Predicated region
    $region14: #{tpu_custom_call.1} parent=1 // pred_check
      _
    $region15: #{tpu_custom_call.1} parent=1 // pred_check_branch
      %37 = sbr.rel (0) target = $region17
    $region16: #{tpu_custom_call.1} parent=1 // pred_region
      %s38 = sadd.s32 0, 0
      %p39 = scmp.lt.s32.totalorder %s38, 0
      %s40 = scalar_select %p39, %s38, 0
      %s41 = scalar_lea.vmem %s3, %s40
      %s42 = sadd.s32 0, 0
    $region17: #{tpu_custom_call.1} parent=1 // pred_fallthru
      _
    %s43 = sadd.s32 0, 0
    %p44 = scmp.lt.s32.totalorder %s43, 0
    %s45 = scalar_select %p44, %s43, 0
    %s46 = smul.addr %s45, 8
    %s47 = scalar_lea.vmem %s0, %s46
    %s48 = sadd.s32 0, 0
    %p49 = scmp.lt.s32.totalorder %s48, 0
    %s50 = scalar_select %p49, %s48, 0
    %s51 = smul.addr %s50, 8
    %s52 = scalar_lea.vmem %s1, %s51
    %s53 = sadd.s32 0, 0
    %p54 = scmp.lt.s32.totalorder %s53, 0
    %s55 = scalar_select %p54, %s53, 0
    %s56 = scalar_lea.vmem %s2, %s55
    %s57 = sadd.s32 0, 0
    %p58 = scmp.lt.s32.totalorder %s57, 0
    %s59 = scalar_select %p58, %s57, 0
    %s60 = scalar_lea.vmem %s3, %s59
    %s61 = sadd.s32 0, 0
    %p62 = scmp.lt.s32.totalorder %s61, 0
    %s63 = scalar_select %p62, %s61, 0
    %s64 = smul.addr %s63, 8
    %s65 = scalar_lea.vmem %s0, %s64
    %s66 = sadd.s32 0, 0
    %s67 = sadd.s32 0, 0
    %p68 = scmp.lt.s32.totalorder %s67, 0
    %s69 = scalar_select %p68, %s67, 0
    %s70 = smul.addr %s69, 8
    %s71 = scalar_lea.vmem %s1, %s70
    %s72 = sadd.s32 0, 0
    %s73 = sadd.s32 0, 0
    %p74 = scmp.lt.s32.totalorder %s73, 0
    %s75 = scalar_select %p74, %s73, 0
    %s76 = scalar_lea.vmem %s2, %s75
    %s77 = sadd.s32 0, 0
    %s78 = sadd.s32 0, 0
    %p79 = scmp.lt.s32.totalorder %s78, 0
    %s80 = scalar_select %p79, %s78, 0
    %s81 = scalar_lea.vmem %s3, %s80
    %s82 = sadd.s32 0, 0
    %p83 = scmp.eq.s32.totalorder 0, 0
    // Predicated region
    $region18: #{tpu_custom_call.1} parent=1 // pred_check
      %p84 = pneg %p83
    $region19: #{tpu_custom_call.1} parent=1 // pred_check_branch
      %86 = sbr.rel (%p84) target = $region21
    $region20: #{tpu_custom_call.1} parent=1 // pred_region
      %vm87 = vcmask 0
      %88 = vst.msk [vmem:[#allocation2] sm:$0x1] %vm87, 0.0
      %89 = vst.msk [vmem:[#allocation4] sm:$0x1] %vm87, 0.0
    $region21: #{tpu_custom_call.1} parent=1 // pred_fallthru
      _
    %v90 = vld [vmem:[%s65] sm:$0xff]
    %v91 = vld [vmem:[%s71] sm:$0xff]
    %v92 = vlaneseq
    %v93 = vand.u32 %v92, 127
    %94 = vset.pattern.permute.xlu0 0
    %95 = vperm.xlu0 %94, %v91
    %v96 = vpop.permute.xlu0 %95
    %vm97 = vcmp.eq.s32.totalorder %v93, %v96
    %v98 = vld [vmem:[#allocation2] sm:$0x1]
    %v99 = vsel %vm97, %v90, 0.0
    %vm100 = vcmask 261120
    %v101 = vsel %vm100, %v99, 0.0
    %102 = vadd.xlane.f32.xlu0 %v101
    %v103 = vpop.xlane.xlu0 %102
    %v104 = vrot.slane %v103, 4
    %v105 = vadd.f32 %v103, %v104
    %v106 = vrot.slane %v105, 2
    %v107 = vadd.f32 %v105, %v106
    %v108 = vrot.slane %v107, 1
    %v109 = vadd.f32 %v107, %v108
    %s110 = vtos %v109
    %v111 = vstv %s110
    %v112 = vadd.f32 %v98, %v111
    %vm113 = vcmask 0
    %114 = vst.msk [vmem:[#allocation2] sm:$0x1] %vm113, %v112
    %v115 = vld [vmem:[%s76] sm:$0x1]
    %v116 = vld [vmem:[%s81] sm:$0x1]
    %v117 = vmul.f32 %v115, %v115
    %v118 = vsub.f32 %v116, %v117
    %v119 = vmul.f32 %v116, 1.442695
    %v120 = vpow.pop %v119
    %v121 = vsub.f32 %v118, %v120
    %v122 = vld [vmem:[#allocation4] sm:$0x1]
    %vm123 = vcmask 1040384
    %v124 = vsel %vm123, %v121, 0.0
    %125 = vadd.xlane.f32.xlu0 %v124
    %v126 = vpop.xlane.xlu0 %125
    %v127 = vrot.slane %v126, 4
    %v128 = vadd.f32 %v126, %v127
    %v129 = vrot.slane %v128, 2
    %v130 = vadd.f32 %v128, %v129
    %v131 = vrot.slane %v130, 1
    %v132 = vadd.f32 %v130, %v131
    %s133 = vtos %v132
    %v134 = vstv %s133
    %v135 = vadd.f32 %v122, %v134
    %136 = vst.msk [vmem:[#allocation4] sm:$0x1] %vm113, %v135
    // Predicated region
    $region22: #{tpu_custom_call.1} parent=1 // pred_check
      _
    $region23: #{tpu_custom_call.1} parent=1 // pred_check_branch
      %138 = sbr.rel (0) target = $region25
    $region24: #{tpu_custom_call.1} parent=1 // pred_region
      %s140 = ssub.s32 16, 16
      %141 = vsyncadd [#allocation3], %s140
      %s143 = sshll.u32 [#allocation2], 4
      %s144 = int_to_ptr.vmem [resolvable:$true] %s143
      %146 = dma.vmem_to_hbm [thread:$0]  %s144, 16, %s4, [#allocation3]
    $region25: #{tpu_custom_call.1} parent=1 // pred_fallthru
      _
    // Predicated region
    $region26: #{tpu_custom_call.1} parent=1 // pred_check
      _
    $region27: #{tpu_custom_call.1} parent=1 // pred_check_branch
      %148 = sbr.rel (0) target = $region29
    $region28: #{tpu_custom_call.1} parent=1 // pred_region
      %s150 = ssub.s32 16, 16
      %151 = vsyncadd [#allocation5], %s150
      %s153 = sshll.u32 [#allocation4], 4
      %s154 = int_to_ptr.vmem [resolvable:$true] %s153
      %156 = dma.vmem_to_hbm [thread:$0]  %s154, 16, %s5, [#allocation5]
    $region29: #{tpu_custom_call.1} parent=1 // pred_fallthru
      _
    // Predicated region
    $region30: #{tpu_custom_call.1} parent=1 // pred_check
      _
    $region31: #{tpu_custom_call.1} parent=1 // pred_check_branch
      %158 = sbr.rel (0) target = $region33
    $region32: #{tpu_custom_call.1} parent=1 // pred_region
      %159 = dma.done [#allocation3], 16
    $region33: #{tpu_custom_call.1} parent=1 // pred_fallthru
      _
    // Predicated region
    $region34: #{tpu_custom_call.1} parent=1 // pred_check
      _
    $region35: #{tpu_custom_call.1} parent=1 // pred_check_branch
      %161 = sbr.rel (0) target = $region37
    $region36: #{tpu_custom_call.1} parent=1 // pred_region
      %162 = dma.done [#allocation5], 16
    $region37: #{tpu_custom_call.1} parent=1 // pred_fallthru
      _
    %163 = vsyncpa [#allocation3], 1
    %164 = vsyncpa [#allocation5], 1

</llo_original>
